<compile_context>
chip_gen: v5e
topology: v5e:2x2
jax: 0.10.0
libtpu: 0.0.40
codegen_flags: <defaults>
</compile_context>

<pallas_src>
import functools

import numpy as np
import jax
import jax.numpy as jnp
from jax import lax
from jax.experimental import pallas as pl
from jax.experimental.pallas import tpu as pltpu


# Output-parity phases (pd, ph, pw) and input shifts (sd, sh, sw) in one fixed
# shared order: the wrapper's weight packing and the kernel's RHS rows use it.
_PHASES = [(pd, ph, pw) for pd in (0, 1) for ph in (0, 1) for pw in (0, 1)]
_SHIFTS = _PHASES  # same 8 tuples, same ordering


def _ktap(parity, shift):
    # ConvTranspose3d(k=3, s=2, p=1): output o = 2*i + k - 1.
    # even output: k=1 (shift 0); odd output: k=2 (shift 0) or k=0 (shift 1).
    return 1 if parity == 0 else (2 if shift == 0 else 0)


def _choose_dt(d_dim, hw, cin, cout, budget_bytes=8 << 20):
    """Largest D-tile (in whole planes) that divides D, keeps the flat M-tile
    lane-aligned (Dt*H*W % 128 == 0) and keeps the dominant per-step VMEM
    buffers under `budget_bytes` (conservative enough for v7x's 64 MiB VMEM).
    Falls back to Dt = D (block == full M axis, always a legal BlockSpec)."""
    per_plane = hw * (2 * (2 * cin) * 2        # x + halo tiles, double-buffered
                      + 2 * (8 * cout) * 2     # bf16 y tile, double-buffered
                      + (8 * cin) * 2          # rhs scratch
                      + (3 * cin) * 2          # concat + shift temporaries
                      + (8 * cout) * 4 * 2)    # f32 accumulator (+ store temp)
    dt = d_dim
    for cand in range(1, d_dim):
        if (d_dim % cand == 0 and (cand * hw) % 128 == 0
                and cand * per_plane <= budget_bytes):
            dt = cand                          # keep the largest valid dt < D
    return dt


# -----------------------------------------------------------------------------
# Kernel: fused sub-pixel transposed conv (all 8 phases in one GEMM) + per-tile
# BN partial statistics.  One grid step = one (batch, D-tile).
#   x_ref:   (1, Cin, Mt)        bf16  current D-tile, M flattened on lanes
#   xn_ref:  (1, Cin, Mt)        bf16  next D-tile (its first plane = halo)
#   w_ref:   (8*Cout, 8*Cin)     bf16  block-structured phase x shift weights
#   mh_ref:  (1, Mt)             bf16  {0,1}: h+1 still inside the plane
#   mw_ref:  (1, Mt)             bf16  {0,1}: w+1 still inside the plane
#   y_ref:   (1, 8*Cout, Mt)     bf16  phase-major conv output tile
#   sum_ref: (1, 8, Cout)        f32   per-(phase, channel) partial sum
#   ssq_ref: (1, 8, Cout)        f32   per-(phase, channel) partial sum of sq.
#   rhs_ref: (8*Cin, Mt)         bf16  VMEM scratch: shared shifted-copy RHS
# -----------------------------------------------------------------------------
def _deconv_kernel(x_ref, xn_ref, w_ref, mh_ref, mw_ref,
                   y_ref, sum_ref, ssq_ref, rhs_ref,
                   *, cin, cout, h_dim, w_dim, mt, pad):
    hw = h_dim * w_dim

    xm = x_ref[0]                               # (Cin, Mt)
    # Halo plane (d = tile_end) = first H*W columns of the next D-tile.  On
    # the last tile that plane is past the volume -> contributes zero.
    is_last = pl.program_id(1) == pl.num_programs(1) - 1
    xh = xn_ref[0][:, :hw]                      # (Cin, HW)
    xh = jnp.where(is_last, jnp.zeros_like(xh), xh)
    zpad = jnp.zeros((cin, pad), xm.dtype)      # static zero tail for slicing
    xt = jnp.concatenate([xm, xh, zpad], axis=1)  # (Cin, Mt + HW + pad)

    mh = mh_ref[...]                            # (1, Mt)
    mw = mw_ref[...]
    mhw = mh * mw

    # Shared RHS: the 8 distinct shifted copies, masked once per shift.
    for k, (sd, sh, sw) in enumerate(_SHIFTS):
        off = sd * hw + sh * w_dim + sw
        v = xm if off == 0 else xt[:, off:off + mt]
        if sh and sw:
            v = v * mhw
        elif sh:
            v = v * mh
        elif sw:
            v = v * mw
        rhs_ref[k * cin:(k + 1) * cin, :] = v

    # One block-structured GEMM covering all 8 output-parity phases.
    acc = jnp.dot(w_ref[...], rhs_ref[...],
                  preferred_element_type=jnp.float32)      # (8*Cout, Mt) f32
    y_ref[0] = acc.astype(y_ref.dtype)

    # Per-(phase, channel) partial BN statistics for this (batch, D-tile).
    acc3 = acc.reshape(8, cout, mt)
    sum_ref[0] = jnp.sum(acc3, axis=-1)
    ssq_ref[0] = jnp.sum(acc3 * acc3, axis=-1)


def upconv_forward(x_ncdhw, w_t, bias, gamma, beta, eps=1e-5):
    """x_ncdhw: (N, Cin, D, H, W); w_t: (Cin, Cout, 3, 3, 3) (PyTorch layout).

    `bias` is accepted for API fidelity but unused: a per-channel constant
    added before training-mode BatchNorm only shifts the batch mean and is
    cancelled exactly, so the forward output does not depend on it."""
    del bias
    N, Cin, D, H, W = x_ncdhw.shape
    Cout = w_t.shape[1]
    HW, M = H * W, D * H * W

    dt = _choose_dt(D, HW, Cin, Cout)
    n_dt = D // dt
    mt = dt * HW
    pad = ((W + 1 + 127) // 128) * 128          # >= max in-plane shift (W + 1)

    # Layout plumbing (cheap, one XLA pass): channels-first, flat M, bf16.
    x_flat = x_ncdhw.reshape(N, Cin, M).astype(jnp.bfloat16)

    # {0,1} validity masks for +1 shifts along H / W.  The pattern repeats per
    # plane, so one (1, Mt) array serves every D-tile of every batch element.
    pos = np.arange(mt)
    mask_h = jnp.asarray(((pos // W) % H < H - 1).astype(np.float32),
                         jnp.bfloat16).reshape(1, mt)
    mask_w = jnp.asarray((pos % W < W - 1).astype(np.float32),
                         jnp.bfloat16).reshape(1, mt)

    # Block-structured weights (8*Cout, 8*Cin): row block = output phase,
    # column block = input shift; zero where the phase doesn't use the shift.
    rows = []
    for (pd, ph, pw) in _PHASES:
        blocks = []
        for (sd, sh, sw) in _SHIFTS:
            if sd <= pd and sh <= ph and sw <= pw:
                blk = w_t[:, :, _ktap(pd, sd), _ktap(ph, sh), _ktap(pw, sw)].T
            else:
                blk = jnp.zeros((Cout, Cin), w_t.dtype)
            blocks.append(blk)
        rows.append(jnp.concatenate(blocks, axis=1))       # (Cout, 8*Cin)
    w_packed = jnp.concatenate(rows, axis=0).astype(jnp.bfloat16)

    kern = functools.partial(_deconv_kernel, cin=Cin, cout=Cout,
                             h_dim=H, w_dim=W, mt=mt, pad=pad)

    z, psum, pssq = pl.pallas_call(
        kern,
        grid=(N, n_dt),
        in_specs=[
            pl.BlockSpec((1, Cin, mt), lambda n, t: (n, 0, t)),
            pl.BlockSpec((1, Cin, mt),
                         lambda n, t: (n, 0, jnp.minimum(t + 1, n_dt - 1))),
            pl.BlockSpec((8 * Cout, 8 * Cin), lambda n, t: (0, 0)),
            pl.BlockSpec((1, mt), lambda n, t: (0, 0)),
            pl.BlockSpec((1, mt), lambda n, t: (0, 0)),
        ],
        out_specs=[
            pl.BlockSpec((1, 8 * Cout, mt), lambda n, t: (n, 0, t)),
            pl.BlockSpec((1, 8, Cout), lambda n, t: (n, t, 0)),
            pl.BlockSpec((1, 8, Cout), lambda n, t: (n, t, 0)),
        ],
        out_shape=[
            jax.ShapeDtypeStruct((N, 8 * Cout, M), jnp.bfloat16),
            jax.ShapeDtypeStruct((N, 8 * n_dt, Cout), jnp.float32),
            jax.ShapeDtypeStruct((N, 8 * n_dt, Cout), jnp.float32),
        ],
        scratch_shapes=[pltpu.VMEM((8 * Cin, mt), jnp.bfloat16)],
        compiler_params=pltpu.CompilerParams(
            dimension_semantics=("parallel", "parallel"),
            vmem_limit_bytes=64 * 1024 * 1024),
    )(x_flat, x_flat, w_packed, mask_h, mask_w)

    # ---- training-mode BatchNorm statistics (biased variance, like torch) ----
    count = jnp.float32(N * 8 * M)                       # == N * OD*OH*OW
    mean = jnp.sum(psum, axis=(0, 1)) / count            # (Cout,)
    var = jnp.maximum(jnp.sum(pssq, axis=(0, 1)) / count - mean * mean, 0.0)
    inv = gamma.astype(jnp.float32) * lax.rsqrt(var + eps)
    shift = beta.astype(jnp.float32) - mean * inv

    # ---- BN affine + ReLU, fused by XLA into the phase de-interleave ----
    zf = z.reshape(N, 2, 2, 2, Cout, D, H, W).astype(jnp.float32)
    scale_b = inv.reshape(1, 1, 1, 1, Cout, 1, 1, 1)
    shift_b = shift.reshape(1, 1, 1, 1, Cout, 1, 1, 1)
    out = jnp.maximum(zf * scale_b + shift_b, 0.0)
    out = jnp.transpose(out, (0, 4, 5, 1, 6, 2, 7, 3))    # (N,C,D,2,H,2,W,2)
    return out.reshape(N, Cout, 2 * D, 2 * H, 2 * W)


# -----------------------------------------------------------------------------
# Pure-JAX reference (independent of the kernel path) for a sanity check.
# -----------------------------------------------------------------------------
def _reference(x_ncdhw, w_t, bias, gamma, beta, eps=1e-5):
    Cout = w_t.shape[1]
    wf = jnp.transpose(jnp.flip(w_t, axis=(2, 3, 4)), (1, 0, 2, 3, 4))  # OIDHW
    y = jax.lax.conv_general_dilated(
        x_ncdhw.astype(jnp.bfloat16), wf.astype(jnp.bfloat16),
        window_strides=(1, 1, 1),
        padding=((1, 2), (1, 2), (1, 2)),
        lhs_dilation=(2, 2, 2),
        dimension_numbers=("NCDHW", "OIDHW", "NCDHW"),
        preferred_element_type=jnp.float32)
    y = y + bias.reshape(1, Cout, 1, 1, 1)
    mean = jnp.mean(y, axis=(0, 2, 3, 4), keepdims=True)
    var = jnp.mean((y - mean) ** 2, axis=(0, 2, 3, 4), keepdims=True)
    yn = (y - mean) / jnp.sqrt(var + eps)
    yn = yn * gamma.reshape(1, Cout, 1, 1, 1) + beta.reshape(1, Cout, 1, 1, 1)
    return jnp.maximum(yn, 0.0)


if __name__ == "__main__":
    key = jax.random.PRNGKey(0)
    k1, k2, k3, k4, k5 = jax.random.split(key, 5)

    N, Cin, Cout, D, H, W = 2, 8, 4, 8, 8, 8
    x = jax.random.normal(k1, (N, Cin, D, H, W), jnp.float32)
    w_t = 0.1 * jax.random.normal(k2, (Cin, Cout, 3, 3, 3), jnp.float32)
    bias = 0.1 * jax.random.normal(k3, (Cout,), jnp.float32)
    gamma = 1.0 + 0.1 * jax.random.normal(k4, (Cout,), jnp.float32)
    beta = 0.1 * jax.random.normal(k5, (Cout,), jnp.float32)
    # TODO(synk): BatchNorm3d running_mean/running_var buffer updates (training
    # side effect) are not modeled; they do not affect the forward output.

    fwd = jax.jit(upconv_forward)
    out = jax.block_until_ready(fwd(x, w_t, bias, gamma, beta))
    assert out.shape == (N, Cout, 2 * D, 2 * H, 2 * W)

    ref = _reference(x, w_t, bias, gamma, beta)
    # bf16 GEMM inputs + bf16 conv intermediate vs f32-stored reference.
    np.testing.assert_allclose(np.asarray(out), np.asarray(ref),
                               rtol=2e-2, atol=2e-2)
    print("KERNEL_OK")
</pallas_src>

<mosaic_0001>
module attributes {stable_mosaic.version = 11 : i64} {
  func.func @_deconv_kernel(%arg0: i32, %arg1: i32, %arg2: memref<1x8x256xbf16, #tpu.memory_space<vmem>>, %arg3: memref<1x8x256xbf16, #tpu.memory_space<vmem>>, %arg4: memref<32x64xbf16, #tpu.memory_space<vmem>>, %arg5: memref<1x256xbf16, #tpu.memory_space<vmem>>, %arg6: memref<1x256xbf16, #tpu.memory_space<vmem>>, %arg7: memref<1x32x256xbf16, #tpu.memory_space<vmem>>, %arg8: memref<1x8x4xf32, #tpu.memory_space<vmem>>, %arg9: memref<1x8x4xf32, #tpu.memory_space<vmem>>, %arg10: memref<64x256xbf16, #tpu.memory_space<vmem>>) attributes {dimension_semantics = [#tpu.dimension_semantics<parallel>, #tpu.dimension_semantics<parallel>], iteration_bounds = array<i64: 2, 2>, scalar_prefetch = 0 : i64, scratch_operands = 1 : i64, tpu.core_type = #tpu.core_type<tc>, window_params = [{transform_indices = @transform_0, window_bounds = array<i64: 1, 8, 256>}, {transform_indices = @transform_1, window_bounds = array<i64: 1, 8, 256>}, {pipeline_mode = #tpu.pipeline_mode<synchronous>, transform_indices = @transform_2, window_bounds = array<i64: 32, 64>}, {pipeline_mode = #tpu.pipeline_mode<synchronous>, transform_indices = @transform_3, window_bounds = array<i64: 1, 256>}, {pipeline_mode = #tpu.pipeline_mode<synchronous>, transform_indices = @transform_4, window_bounds = array<i64: 1, 256>}, {transform_indices = @transform_5, window_bounds = array<i64: 1, 32, 256>}, {transform_indices = @transform_6, window_bounds = array<i64: 1, 8, 4>}, {transform_indices = @transform_7, window_bounds = array<i64: 1, 8, 4>}]} {
    %c0 = arith.constant 0 : index
    %c0_0 = arith.constant 0 : index
    %c0_1 = arith.constant 0 : index
    %0 = vector.load %arg2[%c0, %c0_0, %c0_1] : memref<1x8x256xbf16, #tpu.memory_space<vmem>>, vector<1x8x256xbf16>
    %1 = vector.shape_cast %0 : vector<1x8x256xbf16> to vector<8x256xbf16>
    %c1_i32 = arith.constant 1 : i32
    %2 = arith.cmpi eq, %arg1, %c1_i32 : i32
    %c0_2 = arith.constant 0 : index
    %c0_3 = arith.constant 0 : index
    %c0_4 = arith.constant 0 : index
    %3 = vector.load %arg3[%c0_2, %c0_3, %c0_4] : memref<1x8x256xbf16, #tpu.memory_space<vmem>>, vector<1x8x256xbf16>
    %4 = vector.shape_cast %3 : vector<1x8x256xbf16> to vector<8x256xbf16>
    %5 = vector.extract_strided_slice %4 {offsets = [0, 0], sizes = [8, 64], strides = [1, 1]} : vector<8x256xbf16> to vector<8x64xbf16>
    %cst = arith.constant 0.000000e+00 : bf16
    %6 = vector.broadcast %cst : bf16 to vector<8x64xbf16>
    %7 = arith.select %2, %6, %5 : vector<8x64xbf16>
    %cst_5 = arith.constant 0.000000e+00 : bf16
    %8 = vector.broadcast %cst_5 : bf16 to vector<8x128xbf16>
    %9 = tpu.concatenate %1, %7, %8 in 1 : vector<8x256xbf16>, vector<8x64xbf16>, vector<8x128xbf16> -> vector<8x448xbf16>
    %c0_6 = arith.constant 0 : index
    %c0_7 = arith.constant 0 : index
    %10 = vector.load %arg5[%c0_6, %c0_7] : memref<1x256xbf16, #tpu.memory_space<vmem>>, vector<1x256xbf16>
    %c0_8 = arith.constant 0 : index
    %c0_9 = arith.constant 0 : index
    %11 = vector.load %arg6[%c0_8, %c0_9] : memref<1x256xbf16, #tpu.memory_space<vmem>>, vector<1x256xbf16>
    %12 = arith.mulf %10, %11 : vector<1x256xbf16>
    %c0_10 = arith.constant 0 : index
    %c0_11 = arith.constant 0 : index
    %13 = vector.load %arg10[%c0_10, %c0_11] : memref<64x256xbf16, #tpu.memory_space<vmem>>, vector<8x256xbf16>
    tpu.vector_store %arg10[%c0_10, %c0_11], %1 {strides = array<i32>} : memref<64x256xbf16, #tpu.memory_space<vmem>>, vector<8x256xbf16>,
    %14 = vector.extract_strided_slice %9 {offsets = [0, 1], sizes = [8, 256], strides = [1, 1]} : vector<8x448xbf16> to vector<8x256xbf16>
    %15 = vector.broadcast %11 : vector<1x256xbf16> to vector<8x256xbf16>
    %16 = arith.mulf %14, %15 : vector<8x256xbf16>
    %c8 = arith.constant 8 : index
    %c0_12 = arith.constant 0 : index
    %17 = vector.load %arg10[%c8, %c0_12] : memref<64x256xbf16, #tpu.memory_space<vmem>>, vector<8x256xbf16>
    tpu.vector_store %arg10[%c8, %c0_12], %16 {strides = array<i32>} : memref<64x256xbf16, #tpu.memory_space<vmem>>, vector<8x256xbf16>,
    %18 = vector.extract_strided_slice %9 {offsets = [0, 8], sizes = [8, 256], strides = [1, 1]} : vector<8x448xbf16> to vector<8x256xbf16>
    %19 = vector.broadcast %10 : vector<1x256xbf16> to vector<8x256xbf16>
    %20 = arith.mulf %18, %19 : vector<8x256xbf16>
    %c16 = arith.constant 16 : index
    %c0_13 = arith.constant 0 : index
    %21 = vector.load %arg10[%c16, %c0_13] : memref<64x256xbf16, #tpu.memory_space<vmem>>, vector<8x256xbf16>
    tpu.vector_store %arg10[%c16, %c0_13], %20 {strides = array<i32>} : memref<64x256xbf16, #tpu.memory_space<vmem>>, vector<8x256xbf16>,
    %22 = vector.extract_strided_slice %9 {offsets = [0, 9], sizes = [8, 256], strides = [1, 1]} : vector<8x448xbf16> to vector<8x256xbf16>
    %23 = vector.broadcast %12 : vector<1x256xbf16> to vector<8x256xbf16>
    %24 = arith.mulf %22, %23 : vector<8x256xbf16>
    %c24 = arith.constant 24 : index
    %c0_14 = arith.constant 0 : index
    %25 = vector.load %arg10[%c24, %c0_14] : memref<64x256xbf16, #tpu.memory_space<vmem>>, vector<8x256xbf16>
    tpu.vector_store %arg10[%c24, %c0_14], %24 {strides = array<i32>} : memref<64x256xbf16, #tpu.memory_space<vmem>>, vector<8x256xbf16>,
    %26 = vector.extract_strided_slice %9 {offsets = [0, 64], sizes = [8, 256], strides = [1, 1]} : vector<8x448xbf16> to vector<8x256xbf16>
    %c32 = arith.constant 32 : index
    %c0_15 = arith.constant 0 : index
    %27 = vector.load %arg10[%c32, %c0_15] : memref<64x256xbf16, #tpu.memory_space<vmem>>, vector<8x256xbf16>
    tpu.vector_store %arg10[%c32, %c0_15], %26 {strides = array<i32>} : memref<64x256xbf16, #tpu.memory_space<vmem>>, vector<8x256xbf16>,
    %28 = vector.extract_strided_slice %9 {offsets = [0, 65], sizes = [8, 256], strides = [1, 1]} : vector<8x448xbf16> to vector<8x256xbf16>
    %29 = vector.broadcast %11 : vector<1x256xbf16> to vector<8x256xbf16>
    %30 = arith.mulf %28, %29 : vector<8x256xbf16>
    %c40 = arith.constant 40 : index
    %c0_16 = arith.constant 0 : index
    %31 = vector.load %arg10[%c40, %c0_16] : memref<64x256xbf16, #tpu.memory_space<vmem>>, vector<8x256xbf16>
    tpu.vector_store %arg10[%c40, %c0_16], %30 {strides = array<i32>} : memref<64x256xbf16, #tpu.memory_space<vmem>>, vector<8x256xbf16>,
    %32 = vector.extract_strided_slice %9 {offsets = [0, 72], sizes = [8, 256], strides = [1, 1]} : vector<8x448xbf16> to vector<8x256xbf16>
    %33 = vector.broadcast %10 : vector<1x256xbf16> to vector<8x256xbf16>
    %34 = arith.mulf %32, %33 : vector<8x256xbf16>
    %c48 = arith.constant 48 : index
    %c0_17 = arith.constant 0 : index
    %35 = vector.load %arg10[%c48, %c0_17] : memref<64x256xbf16, #tpu.memory_space<vmem>>, vector<8x256xbf16>
    tpu.vector_store %arg10[%c48, %c0_17], %34 {strides = array<i32>} : memref<64x256xbf16, #tpu.memory_space<vmem>>, vector<8x256xbf16>,
    %36 = vector.extract_strided_slice %9 {offsets = [0, 73], sizes = [8, 256], strides = [1, 1]} : vector<8x448xbf16> to vector<8x256xbf16>
    %37 = vector.broadcast %12 : vector<1x256xbf16> to vector<8x256xbf16>
    %38 = arith.mulf %36, %37 : vector<8x256xbf16>
    %c56 = arith.constant 56 : index
    %c0_18 = arith.constant 0 : index
    %39 = vector.load %arg10[%c56, %c0_18] : memref<64x256xbf16, #tpu.memory_space<vmem>>, vector<8x256xbf16>
    tpu.vector_store %arg10[%c56, %c0_18], %38 {strides = array<i32>} : memref<64x256xbf16, #tpu.memory_space<vmem>>, vector<8x256xbf16>,
    %c0_19 = arith.constant 0 : index
    %c0_20 = arith.constant 0 : index
    %40 = vector.load %arg4[%c0_19, %c0_20] : memref<32x64xbf16, #tpu.memory_space<vmem>>, vector<32x64xbf16>
    %c0_21 = arith.constant 0 : index
    %c0_22 = arith.constant 0 : index
    %41 = vector.load %arg10[%c0_21, %c0_22] : memref<64x256xbf16, #tpu.memory_space<vmem>>, vector<64x256xbf16>
    %cst_23 = arith.constant dense<0.000000e+00> : vector<32x256xf32>
    %42 = tpu.matmul %40, %41, %cst_23 {dimension_numbers = #tpu.dot_dimension_numbers<[1], [0], [0], [1], [0, 0, 1, 1], [], []>} : vector<32x64xbf16>, vector<64x256xbf16>, vector<32x256xf32> -> vector<32x256xf32>
    %43 = arith.truncf %42 : vector<32x256xf32> to vector<32x256xbf16>
    %c0_24 = arith.constant 0 : index
    %c0_25 = arith.constant 0 : index
    %c0_26 = arith.constant 0 : index
    %44 = vector.load %arg7[%c0_24, %c0_25, %c0_26] : memref<1x32x256xbf16, #tpu.memory_space<vmem>>, vector<1x32x256xbf16>
    %45 = vector.shape_cast %44 : vector<1x32x256xbf16> to vector<32x256xbf16>
    %46 = vector.shape_cast %43 : vector<32x256xbf16> to vector<1x32x256xbf16>
    tpu.vector_store %arg7[%c0_24, %c0_25, %c0_26], %46 {strides = array<i32>} : memref<1x32x256xbf16, #tpu.memory_space<vmem>>, vector<1x32x256xbf16>,
    %47 = vector.shape_cast %42 : vector<32x256xf32> to vector<8x4x256xf32>
    %cst_27 = arith.constant dense<0.000000e+00> : vector<8x4xf32>
    %48 = vector.multi_reduction <add>, %47, %cst_27 [2] : vector<8x4x256xf32> to vector<8x4xf32>
    %c0_28 = arith.constant 0 : index
    %c0_29 = arith.constant 0 : index
    %c0_30 = arith.constant 0 : index
    %49 = vector.load %arg8[%c0_28, %c0_29, %c0_30] : memref<1x8x4xf32, #tpu.memory_space<vmem>>, vector<1x8x4xf32>
    %50 = vector.shape_cast %49 : vector<1x8x4xf32> to vector<8x4xf32>
    %51 = vector.shape_cast %48 : vector<8x4xf32> to vector<1x8x4xf32>
    tpu.vector_store %arg8[%c0_28, %c0_29, %c0_30], %51 {strides = array<i32>} : memref<1x8x4xf32, #tpu.memory_space<vmem>>, vector<1x8x4xf32>,
    %52 = arith.mulf %47, %47 : vector<8x4x256xf32>
    %cst_31 = arith.constant dense<0.000000e+00> : vector<8x4xf32>
    %53 = vector.multi_reduction <add>, %52, %cst_31 [2] : vector<8x4x256xf32> to vector<8x4xf32>
    %c0_32 = arith.constant 0 : index
    %c0_33 = arith.constant 0 : index
    %c0_34 = arith.constant 0 : index
    %54 = vector.load %arg9[%c0_32, %c0_33, %c0_34] : memref<1x8x4xf32, #tpu.memory_space<vmem>>, vector<1x8x4xf32>
    %55 = vector.shape_cast %54 : vector<1x8x4xf32> to vector<8x4xf32>
    %56 = vector.shape_cast %53 : vector<8x4xf32> to vector<1x8x4xf32>
    tpu.vector_store %arg9[%c0_32, %c0_33, %c0_34], %56 {strides = array<i32>} : memref<1x8x4xf32, #tpu.memory_space<vmem>>, vector<1x8x4xf32>,
    return
  }
  func.func @transform_0(%arg0: i32, %arg1: i32) -> (i32, i32, i32) {
    %c0_i32 = arith.constant 0 : i32
    %c0_i32_0 = arith.constant 0 : i32
    return %arg0, %c0_i32, %arg1 : i32, i32, i32
  }
  func.func @transform_1(%arg0: i32, %arg1: i32) -> (i32, i32, i32) {
    %c1_i32 = arith.constant 1 : i32
    %0 = arith.addi %arg1, %c1_i32 : i32
    %c1_i32_0 = arith.constant 1 : i32
    %1 = arith.minsi %0, %c1_i32_0 : i32
    %c0_i32 = arith.constant 0 : i32
    %c0_i32_1 = arith.constant 0 : i32
    return %arg0, %c0_i32, %1 : i32, i32, i32
  }
  func.func @transform_2(%arg0: i32, %arg1: i32) -> (i32, i32) {
    %c0_i32 = arith.constant 0 : i32
    %c0_i32_0 = arith.constant 0 : i32
    %c0_i32_1 = arith.constant 0 : i32
    return %c0_i32, %c0_i32_0 : i32, i32
  }
  func.func @transform_3(%arg0: i32, %arg1: i32) -> (i32, i32) {
    %c0_i32 = arith.constant 0 : i32
    %c0_i32_0 = arith.constant 0 : i32
    %c0_i32_1 = arith.constant 0 : i32
    return %c0_i32, %c0_i32_0 : i32, i32
  }
  func.func @transform_4(%arg0: i32, %arg1: i32) -> (i32, i32) {
    %c0_i32 = arith.constant 0 : i32
    %c0_i32_0 = arith.constant 0 : i32
    %c0_i32_1 = arith.constant 0 : i32
    return %c0_i32, %c0_i32_0 : i32, i32
  }
  func.func @transform_5(%arg0: i32, %arg1: i32) -> (i32, i32, i32) {
    %c0_i32 = arith.constant 0 : i32
    %c0_i32_0 = arith.constant 0 : i32
    return %arg0, %c0_i32, %arg1 : i32, i32, i32
  }
  func.func @transform_6(%arg0: i32, %arg1: i32) -> (i32, i32, i32) {
    %c0_i32 = arith.constant 0 : i32
    %c0_i32_0 = arith.constant 0 : i32
    return %arg0, %arg1, %c0_i32 : i32, i32, i32
  }
  func.func @transform_7(%arg0: i32, %arg1: i32) -> (i32, i32, i32) {
    %c0_i32 = arith.constant 0 : i32
    %c0_i32_0 = arith.constant 0 : i32
    return %arg0, %arg1, %c0_i32 : i32, i32, i32
  }
}

</mosaic_0001>

<llo_original>
// kernel: upconv_forward.1
$region0: #{upconv_forward.1}
  #allocation0 [shape = 'u32[]', space=smem, size = 0x4, offset = 0x4, fixed_abs, tag = 'smem constant byte address 0x4 - core index']
  #allocation1 [shape = 'u32[72,128]{1,0:T(1,128)}', space=vmem, size = 0x9000, scoped, tag = 'internal scratch']
  #allocation2 [shape = 'bf16[64,256]{1,0:T(8,128)(2,1)}', space=vmem, size = 0x8000, scoped, tag = 'scratch operand']
  %s0 = inlined_call_operand.vmem [shape: bf16[2,8,512], index: 0, kind: input, shape index: {}, may-alias: {0,1}]
  %s1 = inlined_call_operand.vmem [shape: bf16[2,8,512], index: 1, kind: input, shape index: {}, may-alias: {0,1}]
  %s2 = inlined_call_operand.vmem [shape: bf16[32,64], index: 2, kind: input, shape index: {}]
  %s3 = inlined_call_operand.hbm [shape: bf16[1,256], index: 3, kind: input, shape index: {}]
  %s4 = inlined_call_operand.hbm [shape: bf16[1,256], index: 4, kind: input, shape index: {}]
  %s5 = inlined_call_operand.vmem [shape: bf16[2,32,512], index: 5, kind: output, shape index: {0}]
  %s6 = inlined_call_operand.vmem [shape: f32[2,16,4], index: 6, kind: output, shape index: {1}]
  %s7 = inlined_call_operand.vmem [shape: f32[2,16,4], index: 7, kind: output, shape index: {2}]
  %8 = xla_tuple %s5, %s6, %s7
  %s9 = sld [smem:[#allocation0]]
  $region111: #{upconv_forward.1} parent=0
    _
  %s11 = ssub.s32 1, %s9
  %s12 = scalar_select 0, %s11, %s9
  $region1: #{upconv_forward.1} parent=0
    #allocation3 [shape = 'u8[1024]{0}', space=vmem, size = 0x400, scoped, tag = 'input window, operand 3, single buffered']
    #allocation4 [shape = 's32[2]{0}', space=sflag, size = 0x8, scoped, tag = 'scoped memory for upconv_forward.1']
    #allocation5 [shape = 'u8[1024]{0}', space=vmem, size = 0x400, scoped, tag = 'input window, operand 4, single buffered']
    #allocation6 [shape = 's32[1]{0}', space=sflag, size = 0x4, scoped, tag = 'scoped memory for upconv_forward.1']
    #allocation7 [shape = 'u8[32768]{0}', space=vmem, size = 0x8000, scoped, tag = 'output window, operand 0']
    %13 = vsyncpa [#allocation4], 0
    %14 = vsyncpa [#allocation6], 0
    loop: start=0, step=1, limit=6
    $region2: #{upconv_forward.1} parent=1 // loop_pre_header
      _
    $region3: #{upconv_forward.1} parent=1 // loop_header
      %s16 = sphi 0, %s20
      %p17 = scmp.ge.s32.totalorder %s16, 6
      %s23 = sphi 0, %s35
      %s24 = sphi 0, %s31
      %s25 = sphi 0, %s23
      %s26 = sphi 0, %s24
      %s27 = sphi 0, %s25
      %s28 = sphi 0, %s26
      %s40 = sphi 0, %s42
      %s43 = sphi 0, %s40
      %s44 = sphi 0, %s43
      %s60 = sphi 0, %s44
      %s74 = sphi 0, %s76
      %s77 = sphi 0, %s74
      %s78 = sphi 0, %s77
      %s94 = sphi 0, %s78
      %s98 = sphi 0, %s98
      %s100 = sphi 0, %s98
      %s101 = sphi 0, %s100
      %s115 = sphi 0, %s101
      %s119 = sphi 0, %s119
      %s121 = sphi 0, %s119
      %s122 = sphi 0, %s121
      %s136 = sphi 0, %s122
      %s140 = sphi 0, %s140
      %s142 = sphi 0, %s140
      %s143 = sphi 0, %s142
      %s157 = sphi 0, %s143
      %s165 = sphi 0, %s167
      %s168 = sphi 0, %s165
      %s169 = sphi 0, %s168
      %s185 = sphi 0, %s169
      %s193 = sphi 0, %s195
      %s196 = sphi 0, %s193
      %s197 = sphi 0, %s196
      %s213 = sphi 0, %s197
      %s221 = sphi 0, %s223
      %s224 = sphi 0, %s221
      %s225 = sphi 0, %s224
      %s241 = sphi 0, %s225
    $region4: #{upconv_forward.1} parent=1 // loop_header_branch
      %19 = sbr.rel (%p17) target = $region8
    $region5: #{upconv_forward.1} parent=1 // loop_body
      %s21 = ssub.s32 %s16, 1
      %s22 = ssub.s32 %s16, 2
      %s29 = sadd.s32 1, %s24
      %p30 = scmp.ge.s32.totalorder %s29, 2
      %s31 = scalar_select %p30, 0, %s29
      %s32 = sadd.s32 1, %s23
      %s33 = scalar_select %p30, %s32, %s23
      %p34 = scmp.ge.s32.totalorder %s33, 2
      %s35 = scalar_select %p34, 0, %s33
      %s36 = ssub.s32 %s23, %s35
      %s37 = ssub.s32 %s24, %s31
      %s38 = sor.u32 %s36, %s37
      %p39 = scmp.eq.s32.totalorder %s38, 0
      %s41 = sadd.s32 %s40, 1
      %s42 = scalar_select %p39, %s40, %s41
      %p45 = pneg %p39
      %p46 = scmp.eq.s32.totalorder %s16, 3
      %p47 = por %p45, %p46
      %p48 = scmp.ne.s32.totalorder %s40, %s43
      %p49 = scmp.eq.s32.totalorder %s16, 0
      %p50 = por %p48, %p49
      %p51 = scmp.ne.s32.totalorder %s40, %s43
      %p52 = scmp.eq.s32.totalorder %s21, 3
      %p53 = por %p51, %p52
      %p54 = scmp.ne.s32.totalorder %s43, %s44
      %p55 = scmp.eq.s32.totalorder %s21, 0
      %p56 = por %p54, %p55
      %p57 = scmp.ne.s32.totalorder %s43, %s44
      %p58 = scmp.eq.s32.totalorder %s22, 3
      %p59 = por %p57, %p58
      %p61 = scmp.ne.s32.totalorder %s44, %s60
      %p62 = scmp.eq.s32.totalorder %s22, 0
      %p63 = por %p61, %p62
      %s64 = sadd.s32 %s24, 1
      %p65 = scmp.lt.s32.totalorder %s64, 1
      %s66 = scalar_select %p65, %s64, 1
      %s67 = sadd.s32 %s31, 1
      %p68 = scmp.lt.s32.totalorder %s67, 1
      %s69 = scalar_select %p68, %s67, 1
      %s70 = ssub.s32 %s23, %s35
      %s71 = ssub.s32 %s66, %s69
      %s72 = sor.u32 %s70, %s71
      %p73 = scmp.eq.s32.totalorder %s72, 0
      %s75 = sadd.s32 %s74, 1
      %s76 = scalar_select %p73, %s74, %s75
      %p79 = pneg %p73
      %p80 = scmp.eq.s32.totalorder %s16, 3
      %p81 = por %p79, %p80
      %p82 = scmp.ne.s32.totalorder %s74, %s77
      %p83 = scmp.eq.s32.totalorder %s16, 0
      %p84 = por %p82, %p83
      %p85 = scmp.ne.s32.totalorder %s74, %s77
      %p86 = scmp.eq.s32.totalorder %s21, 3
      %p87 = por %p85, %p86
      %p88 = scmp.ne.s32.totalorder %s77, %s78
      %p89 = scmp.eq.s32.totalorder %s21, 0
      %p90 = por %p88, %p89
      %p91 = scmp.ne.s32.totalorder %s77, %s78
      %p92 = scmp.eq.s32.totalorder %s22, 3
      %p93 = por %p91, %p92
      %p95 = scmp.ne.s32.totalorder %s78, %s94
      %p96 = scmp.eq.s32.totalorder %s22, 0
      %p97 = por %p95, %p96
      %s99 = sadd.s32 %s98, 1
      %p102 = scmp.eq.s32.totalorder %s16, 3
      %p103 = scmp.ne.s32.totalorder %s98, %s100
      %p104 = scmp.eq.s32.totalorder %s16, 0
      %p105 = por %p103, %p104
      %p106 = scmp.ne.s32.totalorder %s98, %s100
      %p107 = scmp.eq.s32.totalorder %s21, 3
      %p108 = por %p106, %p107
      %p109 = scmp.ne.s32.totalorder %s100, %s101
      %p110 = scmp.eq.s32.totalorder %s21, 0
      %p111 = por %p109, %p110
      %p112 = scmp.ne.s32.totalorder %s100, %s101
      %p113 = scmp.eq.s32.totalorder %s22, 3
      %p114 = por %p112, %p113
      %p116 = scmp.ne.s32.totalorder %s101, %s115
      %p117 = scmp.eq.s32.totalorder %s22, 0
      %p118 = por %p116, %p117
      %s120 = sadd.s32 %s119, 1
      %p123 = scmp.eq.s32.totalorder %s16, 3
      %p124 = scmp.ne.s32.totalorder %s119, %s121
      %p125 = scmp.eq.s32.totalorder %s16, 0
      %p126 = por %p124, %p125
      %p127 = scmp.ne.s32.totalorder %s119, %s121
      %p128 = scmp.eq.s32.totalorder %s21, 3
      %p129 = por %p127, %p128
      %p130 = scmp.ne.s32.totalorder %s121, %s122
      %p131 = scmp.eq.s32.totalorder %s21, 0
      %p132 = por %p130, %p131
      %p133 = scmp.ne.s32.totalorder %s121, %s122
      %p134 = scmp.eq.s32.totalorder %s22, 3
      %p135 = por %p133, %p134
      %p137 = scmp.ne.s32.totalorder %s122, %s136
      %p138 = scmp.eq.s32.totalorder %s22, 0
      %p139 = por %p137, %p138
      %s141 = sadd.s32 %s140, 1
      %p144 = scmp.eq.s32.totalorder %s16, 3
      %p145 = scmp.ne.s32.totalorder %s140, %s142
      %p146 = scmp.eq.s32.totalorder %s16, 0
      %p147 = por %p145, %p146
      %p148 = scmp.ne.s32.totalorder %s140, %s142
      %p149 = scmp.eq.s32.totalorder %s21, 3
      %p150 = por %p148, %p149
      %p151 = scmp.ne.s32.totalorder %s142, %s143
      %p152 = scmp.eq.s32.totalorder %s21, 0
      %p153 = por %p151, %p152
      %p154 = scmp.ne.s32.totalorder %s142, %s143
      %p155 = scmp.eq.s32.totalorder %s22, 3
      %p156 = por %p154, %p155
      %p158 = scmp.ne.s32.totalorder %s143, %s157
      %p159 = scmp.eq.s32.totalorder %s22, 0
      %p160 = por %p158, %p159
      %s161 = ssub.s32 %s23, %s35
      %s162 = ssub.s32 %s24, %s31
      %s163 = sor.u32 %s161, %s162
      %p164 = scmp.eq.s32.totalorder %s163, 0
      %s166 = sadd.s32 %s165, 1
      %s167 = scalar_select %p164, %s165, %s166
      %p170 = pneg %p164
      %p171 = scmp.eq.s32.totalorder %s16, 3
      %p172 = por %p170, %p171
      %p173 = scmp.ne.s32.totalorder %s165, %s168
      %p174 = scmp.eq.s32.totalorder %s16, 0
      %p175 = por %p173, %p174
      %p176 = scmp.ne.s32.totalorder %s165, %s168
      %p177 = scmp.eq.s32.totalorder %s21, 3
      %p178 = por %p176, %p177
      %p179 = scmp.ne.s32.totalorder %s168, %s169
      %p180 = scmp.eq.s32.totalorder %s21, 0
      %p181 = por %p179, %p180
      %p182 = scmp.ne.s32.totalorder %s168, %s169
      %p183 = scmp.eq.s32.totalorder %s22, 3
      %p184 = por %p182, %p183
      %p186 = scmp.ne.s32.totalorder %s169, %s185
      %p187 = scmp.eq.s32.totalorder %s22, 0
      %p188 = por %p186, %p187
      %s189 = ssub.s32 %s23, %s35
      %s190 = ssub.s32 %s24, %s31
      %s191 = sor.u32 %s189, %s190
      %p192 = scmp.eq.s32.totalorder %s191, 0
      %s194 = sadd.s32 %s193, 1
      %s195 = scalar_select %p192, %s193, %s194
      %p198 = pneg %p192
      %p199 = scmp.eq.s32.totalorder %s16, 3
      %p200 = por %p198, %p199
      %p201 = scmp.ne.s32.totalorder %s193, %s196
      %p202 = scmp.eq.s32.totalorder %s16, 0
      %p203 = por %p201, %p202
      %p204 = scmp.ne.s32.totalorder %s193, %s196
      %p205 = scmp.eq.s32.totalorder %s21, 3
      %p206 = por %p204, %p205
      %p207 = scmp.ne.s32.totalorder %s196, %s197
      %p208 = scmp.eq.s32.totalorder %s21, 0
      %p209 = por %p207, %p208
      %p210 = scmp.ne.s32.totalorder %s196, %s197
      %p211 = scmp.eq.s32.totalorder %s22, 3
      %p212 = por %p210, %p211
      %p214 = scmp.ne.s32.totalorder %s197, %s213
      %p215 = scmp.eq.s32.totalorder %s22, 0
      %p216 = por %p214, %p215
      %s217 = ssub.s32 %s23, %s35
      %s218 = ssub.s32 %s24, %s31
      %s219 = sor.u32 %s217, %s218
      %p220 = scmp.eq.s32.totalorder %s219, 0
      %s222 = sadd.s32 %s221, 1
      %s223 = scalar_select %p220, %s221, %s222
      %p226 = pneg %p220
      %p227 = scmp.eq.s32.totalorder %s16, 3
      %p228 = por %p226, %p227
      %p229 = scmp.ne.s32.totalorder %s221, %s224
      %p230 = scmp.eq.s32.totalorder %s16, 0
      %p231 = por %p229, %p230
      %p232 = scmp.ne.s32.totalorder %s221, %s224
      %p233 = scmp.eq.s32.totalorder %s21, 3
      %p234 = por %p232, %p233
      %p235 = scmp.ne.s32.totalorder %s224, %s225
      %p236 = scmp.eq.s32.totalorder %s21, 0
      %p237 = por %p235, %p236
      %p238 = scmp.ne.s32.totalorder %s224, %s225
      %p239 = scmp.eq.s32.totalorder %s22, 3
      %p240 = por %p238, %p239
      %p242 = scmp.ne.s32.totalorder %s225, %s241
      %p243 = scmp.eq.s32.totalorder %s22, 0
      %p244 = por %p242, %p243
      %p245 = scmp.le.s32.totalorder 1, %s16
      %p246 = scmp.lt.s32.totalorder %s16, 5
      %p247 = pnand %p245, %p246
      %p248 = pneg %p247
      // Predicated region
      $region9: #{upconv_forward.1} parent=5 // pred_check
        _
      $region10: #{upconv_forward.1} parent=5 // pred_check_branch
        %250 = sbr.rel (%p247) target = $region12
      $region11: #{upconv_forward.1} parent=5 // pred_region
        %s251 = ssub.s32 %s16, 1
        // Predicated region
        $region13: #{upconv_forward.1} parent=11 // pred_check
          %p252 = pneg %p111
        $region14: #{upconv_forward.1} parent=11 // pred_check_branch
          %254 = sbr.rel (%p252) target = $region16
        $region15: #{upconv_forward.1} parent=11 // pred_region
          _
        $region16: #{upconv_forward.1} parent=11 // pred_fallthru
          _
        // Predicated region
        $region17: #{upconv_forward.1} parent=11 // pred_check
          %p255 = pneg %p132
        $region18: #{upconv_forward.1} parent=11 // pred_check_branch
          %257 = sbr.rel (%p255) target = $region20
        $region19: #{upconv_forward.1} parent=11 // pred_region
          %259 = vsyncadd [#allocation4], 0
          %s261 = sshll.u32 %s3, 4
          %s262 = int_to_ptr.hbm [resolvable:$true] %s261
          %s263 = sshll.u32 [#allocation3], 4
          %s264 = int_to_ptr.vmem [resolvable:$true] %s263
          %266 = dma.hbm_to_vmem [thread:$0]  %s262, 32, %s264, [#allocation4]
        $region20: #{upconv_forward.1} parent=11 // pred_fallthru
          _
        // Predicated region
        $region21: #{upconv_forward.1} parent=11 // pred_check
          %p267 = pneg %p153
        $region22: #{upconv_forward.1} parent=11 // pred_check_branch
          %269 = sbr.rel (%p267) target = $region24
        $region23: #{upconv_forward.1} parent=11 // pred_region
          %271 = vsyncadd [#allocation6], 0
          %s273 = sshll.u32 %s4, 4
          %s274 = int_to_ptr.hbm [resolvable:$true] %s273
          %s275 = sshll.u32 [#allocation5], 4
          %s276 = int_to_ptr.vmem [resolvable:$true] %s275
          %278 = dma.hbm_to_vmem [thread:$0]  %s274, 32, %s276, [#allocation6]
        $region24: #{upconv_forward.1} parent=11 // pred_fallthru
          _
      $region12: #{upconv_forward.1} parent=5 // pred_fallthru
        _
      %p279 = scmp.lt.s32.totalorder %s16, 4
      // Predicated region
      $region25: #{upconv_forward.1} parent=5 // pred_check
        %p280 = pneg %p279
      $region26: #{upconv_forward.1} parent=5 // pred_check_branch
        %282 = sbr.rel (%p280) target = $region28
      $region27: #{upconv_forward.1} parent=5 // pred_region
        // Predicated region
        $region29: #{upconv_forward.1} parent=27 // pred_check
          %p283 = pneg %p50
        $region30: #{upconv_forward.1} parent=27 // pred_check_branch
          %285 = sbr.rel (%p283) target = $region32
        $region31: #{upconv_forward.1} parent=27 // pred_region
          %s286 = smul.u32 2, %s24
          %p287 = scmp.lt.s32.totalorder %s23, 1
          %s288 = scalar_select %p287, %s23, 1
          %p289 = scmp.lt.s32.totalorder %s286, 3
          %s290 = scalar_select %p289, %s286, 3
          %s291 = smul.addr %s288, 4
          %s292 = sadd.s32 %s290, %s291
          %s293 = smul.addr %s292, 4
          %s294 = scalar_lea.vmem %s0, %s293
          %s295 = smul.u32 2, %s24
        $region32: #{upconv_forward.1} parent=27 // pred_fallthru
          _
        // Predicated region
        $region33: #{upconv_forward.1} parent=27 // pred_check
          %p296 = pneg %p84
        $region34: #{upconv_forward.1} parent=27 // pred_check_branch
          %298 = sbr.rel (%p296) target = $region36
        $region35: #{upconv_forward.1} parent=27 // pred_region
          %s299 = sadd.s32 %s24, 1
          %p300 = scmp.lt.s32.totalorder %s299, 1
          %s301 = scalar_select %p300, %s299, 1
          %s302 = smul.u32 2, %s301
          %p303 = scmp.lt.s32.totalorder %s23, 1
          %s304 = scalar_select %p303, %s23, 1
          %p305 = scmp.lt.s32.totalorder %s302, 3
          %s306 = scalar_select %p305, %s302, 3
          %s307 = smul.addr %s304, 4
          %s308 = sadd.s32 %s306, %s307
          %s309 = smul.addr %s308, 4
          %s310 = scalar_lea.vmem %s1, %s309
          %s311 = sadd.s32 %s24, 1
          %p312 = scmp.lt.s32.totalorder %s311, 1
          %s313 = scalar_select %p312, %s311, 1
          %s314 = smul.u32 2, %s313
        $region36: #{upconv_forward.1} parent=27 // pred_fallthru
          _
      $region28: #{upconv_forward.1} parent=5 // pred_fallthru
        _
      %p315 = scmp.le.s32.totalorder 1, %s16
      %p316 = scmp.lt.s32.totalorder %s16, 5
      %p317 = pnand %p315, %p316
      %p318 = pneg %p317
      // Predicated region
      $region37: #{upconv_forward.1} parent=5 // pred_check
        _
      $region38: #{upconv_forward.1} parent=5 // pred_check_branch
        %320 = sbr.rel (%p317) target = $region40
      $region39: #{upconv_forward.1} parent=5 // pred_region
        %s321 = ssub.s32 %s16, 1
        // Predicated region
        $region41: #{upconv_forward.1} parent=39 // pred_check
          %p322 = pneg %p132
        $region42: #{upconv_forward.1} parent=39 // pred_check_branch
          %324 = sbr.rel (%p322) target = $region44
        $region43: #{upconv_forward.1} parent=39 // pred_region
          %326 = dma.done [#allocation4], 32
        $region44: #{upconv_forward.1} parent=39 // pred_fallthru
          _
        // Predicated region
        $region45: #{upconv_forward.1} parent=39 // pred_check
          %p327 = pneg %p153
        $region46: #{upconv_forward.1} parent=39 // pred_check_branch
          %329 = sbr.rel (%p327) target = $region48
        $region47: #{upconv_forward.1} parent=39 // pred_region
          %331 = dma.done [#allocation6], 32
        $region48: #{upconv_forward.1} parent=39 // pred_fallthru
          _
        %s332 = smul.u32 2, %s26
        %p333 = scmp.lt.s32.totalorder %s25, 1
        %s334 = scalar_select %p333, %s25, 1
        %p335 = scmp.lt.s32.totalorder %s332, 3
        %s336 = scalar_select %p335, %s332, 3
        %s337 = smul.addr %s334, 4
        %s338 = sadd.s32 %s336, %s337
        %s339 = smul.addr %s338, 4
        %s340 = scalar_lea.vmem %s0, %s339
        %p341 = pneg %p56
        %p342 = pneg %p53
        %s343 = sadd.s32 %s26, 1
        %p344 = scmp.lt.s32.totalorder %s343, 1
        %s345 = scalar_select %p344, %s343, 1
        %s346 = smul.u32 2, %s345
        %p347 = scmp.lt.s32.totalorder %s25, 1
        %s348 = scalar_select %p347, %s25, 1
        %p349 = scmp.lt.s32.totalorder %s346, 3
        %s350 = scalar_select %p349, %s346, 3
        %s351 = smul.addr %s348, 4
        %s352 = sadd.s32 %s350, %s351
        %s353 = smul.addr %s352, 4
        %s354 = scalar_lea.vmem %s1, %s353
        %p355 = pneg %p90
        %p356 = pneg %p87
        %p357 = pneg %p111
        %p358 = pneg %p108
        %p359 = pneg %p132
        %p360 = pneg %p129
        %p361 = pneg %p153
        %p362 = pneg %p150
        %p363 = pneg %p181
        %p364 = pneg %p178
        %s365 = sand.u32 %s168, 1
        %s366 = sand.u32 %s168, 1
        %s367 = smul.addr %s366, 32
        %s368 = scalar_lea.vmem [#allocation7], %s367
        %p369 = pneg %p209
        %p370 = pneg %p206
        %p371 = scmp.lt.s32.totalorder %s25, 1
        %s372 = scalar_select %p371, %s25, 1
        %p373 = scmp.lt.s32.totalorder %s26, 1
        %s374 = scalar_select %p373, %s26, 1
        %s375 = smul.addr %s372, 2
        %s376 = sadd.s32 %s374, %s375
        %s377 = smul.addr %s376, 8
        %s378 = scalar_lea.vmem %s6, %s377
        %p379 = pneg %p237
        %p380 = pneg %p234
        %p381 = scmp.lt.s32.totalorder %s25, 1
        %s382 = scalar_select %p381, %s25, 1
        %p383 = scmp.lt.s32.totalorder %s26, 1
        %s384 = scalar_select %p383, %s26, 1
        %s385 = smul.addr %s382, 2
        %s386 = sadd.s32 %s384, %s385
        %s387 = smul.addr %s386, 8
        %s388 = scalar_lea.vmem %s7, %s387
        %s389 = smul.u32 2, %s26
        %p390 = scmp.lt.s32.totalorder %s25, 1
        %s391 = scalar_select %p390, %s25, 1
        %p392 = scmp.lt.s32.totalorder %s389, 3
        %s393 = scalar_select %p392, %s389, 3
        %s394 = smul.addr %s391, 4
        %s395 = sadd.s32 %s393, %s394
        %s396 = smul.addr %s395, 4
        %s397 = scalar_lea.vmem %s0, %s396
        %s398 = smul.u32 2, %s26
        %s399 = sadd.s32 %s26, 1
        %p400 = scmp.lt.s32.totalorder %s399, 1
        %s401 = scalar_select %p400, %s399, 1
        %s402 = smul.u32 2, %s401
        %p403 = scmp.lt.s32.totalorder %s25, 1
        %s404 = scalar_select %p403, %s25, 1
        %p405 = scmp.lt.s32.totalorder %s402, 3
        %s406 = scalar_select %p405, %s402, 3
        %s407 = smul.addr %s404, 4
        %s408 = sadd.s32 %s406, %s407
        %s409 = smul.addr %s408, 4
        %s410 = scalar_lea.vmem %s1, %s409
        %s411 = sadd.s32 %s26, 1
        %p412 = scmp.lt.s32.totalorder %s411, 1
        %s413 = scalar_select %p412, %s411, 1
        %s414 = smul.u32 2, %s413
        %s415 = smul.u32 2, %s26
        %p416 = scmp.lt.s32.totalorder %s25, 1
        %s417 = scalar_select %p416, %s25, 1
        %p418 = scmp.lt.s32.totalorder %s26, 1
        %s419 = scalar_select %p418, %s26, 1
        %s420 = smul.addr %s417, 2
        %s421 = sadd.s32 %s419, %s420
        %s422 = smul.addr %s421, 8
        %s423 = scalar_lea.vmem %s6, %s422
        %p424 = scmp.lt.s32.totalorder %s25, 1
        %s425 = scalar_select %p424, %s25, 1
        %p426 = scmp.lt.s32.totalorder %s26, 1
        %s427 = scalar_select %p426, %s26, 1
        %s428 = smul.addr %s425, 2
        %s429 = sadd.s32 %s427, %s428
        %s430 = smul.addr %s429, 8
        %s431 = scalar_lea.vmem %s7, %s430
        %v433 = vld [vmem:[%s397] sm:$0xff]
        %p434 = scmp.eq.s32.totalorder %s26, 1
        %v435 = vld [vmem:[%s410] sm:$0xff]
        %s436 = scalar_select %p434, 1, 0
        %v437 = vstv %s436
        %vm438 = vcmp.eq.s32.totalorder %v437, 1
        %v439 = vsel %vm438, 0, %v435
        %v441 = vunpack.c.l.b16 %v433
        %v442 = vunpack.c.h.b16 %v433
        %v443 = vpack.c.b16 %v441, %v441
        %v444 = vpack.c.b16 %v442, %v442
        %vm447 = vcmask 523264
        %v450 = vsel %vm447, %v439, 0
        %v452 = vld [vmem:[#allocation3] sm:$0x3]
        %v453 = vld [vmem:[#allocation5] sm:$0x3]
        %v454 = vunpack.c.l.bf16 %v452
        %v455 = vunpack.c.l.bf16 %v453
        %v456 = vmul.f32 %v454, %v455
        %v458 = vperm.slane %v456, 0
        %v459 = vperm.slane %v456, 2
        %v462 = vpack.c.bf16 %v459, %v458
        %463 = vst [vmem:[#allocation2] sm:$0xff] %v433
        %465 = vst [vmem:[#allocation1] ss:$9 sm:$0xff] %v453
        %v466 = vld [vmem:[#allocation1] sm:$0xff]
        %v467 = vld [vmem:[#allocation1 + $0x9] sm:$0xff]
        %v468 = vpack.i.b16 %v466, %v466
        %v470 = vperm.slane %v468, 0
        %v471 = vpack.i.b16 %v467, %v467
        %v473 = vperm.slane %v471, 0
        %v474 = vunpack.c.l.bf16 %v443
        %v475 = vunpack.c.l.bf16 %v444
        %v476 = vunpack.c.l.bf16 %v450
        %v477 = vunpack.c.l.bf16 %v470
        %v478 = vunpack.c.l.bf16 %v473
        %481 = vrot.lane.b32.xlu0 %v477, 1
        %v482 = vpop.permute.xlu0 %481
        %483 = vrot.lane.b32.xlu0 %v478, 1
        %v484 = vpop.permute.xlu0 %483
        %vm485 = vcmask 7168
        %v486 = vsel %vm485, %v482, %v484
        %v490 = vmul.f32 %v474, %v482
        %v491 = vmul.f32 %v475, %v486
        %v492 = vmul.f32 %v476, %v484
        %v493 = vpack.c.bf16 %v491, %v490
        %v494 = vpack.c.bf16 %v492, %v492
        %497 = vrot.lane.b32.xlu0 %v493, 127
        %v498 = vpop.permute.xlu0 %497
        %499 = vrot.lane.b32.xlu0 %v494, 127
        %v500 = vpop.permute.xlu0 %499
        %v501 = vrot.slane %v498, 4
        %v502 = vrot.slane %v500, 4
        %vm503 = vcmask 1043456
        %v504 = vsel %vm503, %v501, %v502
        %vm505 = vcmask 1039360
        %v506 = vsel %vm505, %v498, %v504
        %508 = vst [vmem:[#allocation2 + $0x8] sm:$0xff] %v506
        %510 = vst [vmem:[#allocation1] ss:$9 sm:$0xff] %v452
        %v511 = vld [vmem:[#allocation1] sm:$0xff]
        %v512 = vld [vmem:[#allocation1 + $0x9] sm:$0xff]
        %v513 = vpack.i.b16 %v511, %v511
        %v515 = vperm.slane %v513, 0
        %v516 = vpack.i.b16 %v512, %v512
        %v518 = vperm.slane %v516, 0
        %v519 = vunpack.c.l.bf16 %v515
        %v520 = vunpack.c.l.bf16 %v518
        %523 = vrot.lane.b32.xlu0 %v519, 8
        %v524 = vpop.permute.xlu0 %523
        %525 = vrot.lane.b32.xlu0 %v520, 8
        %v526 = vpop.permute.xlu0 %525
        %vm527 = vcmask 64512
        %v528 = vsel %vm527, %v524, %v526
        %v532 = vmul.f32 %v474, %v524
        %v533 = vmul.f32 %v475, %v528
        %v534 = vmul.f32 %v476, %v526
        %v535 = vpack.c.bf16 %v533, %v532
        %v536 = vpack.c.bf16 %v534, %v534
        %539 = vrot.lane.b32.xlu0 %v535, 120
        %v540 = vpop.permute.xlu0 %539
        %541 = vrot.lane.b32.xlu0 %v536, 120
        %v542 = vpop.permute.xlu0 %541
        %v543 = vrot.slane %v540, 4
        %v544 = vrot.slane %v542, 4
        %v545 = vsel %vm503, %v543, %v544
        %vm546 = vcmask 982016
        %v547 = vsel %vm546, %v540, %v545
        %549 = vst [vmem:[#allocation2 + $0x10] sm:$0xff] %v547
        %v551 = vunpack.c.l.b16 %v462
        %v552 = vunpack.c.h.b16 %v462
        %v553 = vpack.c.b16 %v551, %v551
        %v554 = vpack.c.b16 %v552, %v552
        %v556 = vpack.i.b16 %v553, %v553
        %v558 = vperm.slane %v556, 0
        %v560 = vpack.i.b16 %v554, %v554
        %v562 = vperm.slane %v560, 0
        %v563 = vunpack.c.l.bf16 %v558
        %v564 = vunpack.c.l.bf16 %v562
        %567 = vrot.lane.b32.xlu0 %v563, 9
        %v568 = vpop.permute.xlu0 %567
        %569 = vrot.lane.b32.xlu0 %v564, 9
        %v570 = vpop.permute.xlu0 %569
        %vm571 = vcmask 72704
        %v572 = vsel %vm571, %v568, %v570
        %v576 = vmul.f32 %v474, %v568
        %v577 = vmul.f32 %v475, %v572
        %v578 = vmul.f32 %v476, %v570
        %v579 = vpack.c.bf16 %v577, %v576
        %v580 = vpack.c.bf16 %v578, %v578
        %583 = vrot.lane.b32.xlu0 %v579, 119
        %v584 = vpop.permute.xlu0 %583
        %585 = vrot.lane.b32.xlu0 %v580, 119
        %v586 = vpop.permute.xlu0 %585
        %v587 = vrot.slane %v584, 4
        %v588 = vrot.slane %v586, 4
        %v589 = vsel %vm503, %v587, %v588
        %vm590 = vcmask 973824
        %v591 = vsel %vm590, %v584, %v589
        %593 = vst [vmem:[#allocation2 + $0x18] sm:$0xff] %v591
        %v595 = vunpack.c.l.b16 %v450
        %v596 = vpack.c.b16 %v442, %v441
        %v597 = vpack.c.b16 %v595, %v595
        %598 = vrot.lane.b32.xlu0 %v596, 64
        %v599 = vpop.permute.xlu0 %598
        %600 = vrot.lane.b32.xlu0 %v597, 64
        %v601 = vpop.permute.xlu0 %600
        %v602 = vrot.slane %v599, 4
        %v603 = vrot.slane %v601, 4
        %v604 = vsel %vm503, %v602, %v603
        %vm605 = vcmask 523264
        %v606 = vsel %vm605, %v599, %v604
        %608 = vst [vmem:[#allocation2 + $0x20] sm:$0xff] %v606
        %609 = vrot.lane.b32.xlu0 %v477, 65
        %v610 = vpop.permute.xlu0 %609
        %611 = vrot.lane.b32.xlu0 %v478, 65
        %v612 = vpop.permute.xlu0 %611
        %vm613 = vcmask 531456
        %v614 = vsel %vm613, %v610, %v612
        %v618 = vmul.f32 %v474, %v610
        %v619 = vmul.f32 %v475, %v614
        %v620 = vmul.f32 %v476, %v612
        %v621 = vpack.c.bf16 %v619, %v618
        %v622 = vpack.c.bf16 %v620, %v620
        %625 = vrot.lane.b32.xlu0 %v621, 63
        %v626 = vpop.permute.xlu0 %625
        %627 = vrot.lane.b32.xlu0 %v622, 63
        %v628 = vpop.permute.xlu0 %627
        %v629 = vrot.slane %v626, 4
        %v630 = vrot.slane %v628, 4
        %v631 = vsel %vm503, %v629, %v630
        %vm632 = vcmask 515072
        %v633 = vsel %vm632, %v626, %v631
        %635 = vst [vmem:[#allocation2 + $0x28] sm:$0xff] %v633
        %636 = vrot.lane.b32.xlu0 %v519, 72
        %v637 = vpop.permute.xlu0 %636
        %638 = vrot.lane.b32.xlu0 %v520, 72
        %v639 = vpop.permute.xlu0 %638
        %vm640 = vcmask 588800
        %v641 = vsel %vm640, %v637, %v639
        %v645 = vmul.f32 %v474, %v637
        %v646 = vmul.f32 %v475, %v641
        %v647 = vmul.f32 %v476, %v639
        %v648 = vpack.c.bf16 %v646, %v645
        %v649 = vpack.c.bf16 %v647, %v647
        %652 = vrot.lane.b32.xlu0 %v648, 56
        %v653 = vpop.permute.xlu0 %652
        %654 = vrot.lane.b32.xlu0 %v649, 56
        %v655 = vpop.permute.xlu0 %654
        %v656 = vrot.slane %v653, 4
        %v657 = vrot.slane %v655, 4
        %v658 = vsel %vm503, %v656, %v657
        %vm659 = vcmask 457728
        %v660 = vsel %vm659, %v653, %v658
        %662 = vst [vmem:[#allocation2 + $0x30] sm:$0xff] %v660
        %663 = vrot.lane.b32.xlu0 %v563, 73
        %v664 = vpop.permute.xlu0 %663
        %665 = vrot.lane.b32.xlu0 %v564, 73
        %v666 = vpop.permute.xlu0 %665
        %vm667 = vcmask 596992
        %v668 = vsel %vm667, %v664, %v666
        %v672 = vmul.f32 %v474, %v664
        %v673 = vmul.f32 %v475, %v668
        %v674 = vmul.f32 %v476, %v666
        %v675 = vpack.c.bf16 %v673, %v672
        %v676 = vpack.c.bf16 %v674, %v674
        %679 = vrot.lane.b32.xlu0 %v675, 55
        %v680 = vpop.permute.xlu0 %679
        %681 = vrot.lane.b32.xlu0 %v676, 55
        %v682 = vpop.permute.xlu0 %681
        %v683 = vrot.slane %v680, 4
        %v684 = vrot.slane %v682, 4
        %v685 = vsel %vm503, %v683, %v684
        %vm686 = vcmask 449536
        %v687 = vsel %vm686, %v680, %v685
        %689 = vst [vmem:[#allocation2 + $0x38] sm:$0xff] %v687
        %v690 = vld [vmem:[%s2] sm:$0xf]
        %v691 = vld [vmem:[%s2 + $0x4] sm:$0xf]
        %v692 = vld [vmem:[%s2 + $0x8] sm:$0xf]
        %v693 = vld [vmem:[%s2 + $0xc] sm:$0xf]
        %v694 = vld [vmem:[#allocation2] sm:$0xff]
        %v695 = vld [vmem:[#allocation2 + $0x8] sm:$0xff]
        %v696 = vld [vmem:[#allocation2 + $0x10] sm:$0xff]
        %v697 = vld [vmem:[#allocation2 + $0x18] sm:$0xff]
        %v698 = vld [vmem:[#allocation2 + $0x20] sm:$0xff]
        %v699 = vld [vmem:[#allocation2 + $0x28] sm:$0xff]
        %v700 = vld [vmem:[#allocation2 + $0x30] sm:$0xff]
        %v701 = vld [vmem:[#allocation2 + $0x38] sm:$0xff]
        %v706 = vunpack.c.l.b16 %v690
        %v707 = vunpack.c.l.b16 %v691
        %v708 = vunpack.c.l.b16 %v692
        %v709 = vunpack.c.l.b16 %v693
        %v710 = vpack.c.b16 %v707, %v706
        %v711 = vpack.c.b16 %v709, %v708
        %v720 = vunpack.c.l.b16 %v694
        %v721 = vunpack.c.h.b16 %v694
        %v722 = vunpack.c.l.b16 %v695
        %v723 = vunpack.c.h.b16 %v695
        %v724 = vunpack.c.l.b16 %v696
        %v725 = vunpack.c.h.b16 %v696
        %v726 = vunpack.c.l.b16 %v697
        %v727 = vunpack.c.h.b16 %v697
        %v728 = vunpack.c.l.b16 %v698
        %v729 = vunpack.c.h.b16 %v698
        %v730 = vunpack.c.l.b16 %v699
        %v731 = vunpack.c.h.b16 %v699
        %v732 = vunpack.c.l.b16 %v700
        %v733 = vunpack.c.h.b16 %v700
        %v734 = vunpack.c.l.b16 %v701
        %v735 = vunpack.c.h.b16 %v701
        %v736 = vpack.c.b16 %v722, %v720
        %v737 = vpack.c.b16 %v723, %v721
        %v738 = vpack.c.b16 %v726, %v724
        %v739 = vpack.c.b16 %v727, %v725
        %v740 = vpack.c.b16 %v730, %v728
        %v741 = vpack.c.b16 %v731, %v729
        %v742 = vpack.c.b16 %v734, %v732
        %v743 = vpack.c.b16 %v735, %v733
        %v753 = vsel %vm447, %v710, 0
        %v756 = vsel %vm447, %v711, 0
        %758 = vmatpush.bf16.msra.mxu0 0
        %759 = vmatpush.bf16.msra.mxu0 0
        %760 = vmatpush.bf16.msra.mxu0 0
        %761 = vmatpush.bf16.msra.mxu0 0
        %762 = vmatpush.bf16.msra.mxu0 %v742
        %763 = vmatpush.bf16.msra.mxu0 %v740
        %764 = vmatpush.bf16.msra.mxu0 %v738
        %765 = vmatpush.bf16.msra.mxu0 %v736
        %766 = vmatmul.bf16.gmra.mxu0 %v753
        %v767 = vpop.f32.mrf.mxu0
        %v768 = vadd.f32 0.0, %v767
        %v769 = vpop.f32.mrf.mxu0
        %v770 = vadd.f32 0.0, %v769
        %771 = vmatmul.bf16.gmra.mxu0 %v756
        %v772 = vpop.f32.mrf.mxu0
        %v773 = vadd.f32 0.0, %v772
        %v774 = vpop.f32.mrf.mxu0
        %v775 = vadd.f32 0.0, %v774
        %776 = vdwg.mxu0
        %777 = vmatpush.bf16.msra.mxu0 0
        %778 = vmatpush.bf16.msra.mxu0 0
        %779 = vmatpush.bf16.msra.mxu0 0
        %780 = vmatpush.bf16.msra.mxu0 0
        %781 = vmatpush.bf16.msra.mxu0 %v743
        %782 = vmatpush.bf16.msra.mxu0 %v741
        %783 = vmatpush.bf16.msra.mxu0 %v739
        %784 = vmatpush.bf16.msra.mxu0 %v737
        %785 = vmatmul.bf16.gmra.mxu0 %v753
        %v786 = vpop.f32.mrf.mxu0
        %v787 = vadd.f32 0.0, %v786
        %v788 = vpop.f32.mrf.mxu0
        %v789 = vadd.f32 0.0, %v788
        %790 = vmatmul.bf16.gmra.mxu0 %v756
        %v791 = vpop.f32.mrf.mxu0
        %v792 = vadd.f32 0.0, %v791
        %v793 = vpop.f32.mrf.mxu0
        %v794 = vadd.f32 0.0, %v793
        %795 = vdwg.mxu0
        %v796 = vpack.c.bf16 %v787, %v768
        %v797 = vpack.c.bf16 %v789, %v770
        %v798 = vpack.c.bf16 %v792, %v773
        %v799 = vpack.c.bf16 %v794, %v775
        %800 = vst [vmem:[%s368] sm:$0xff] %v796
        %801 = vst [vmem:[%s368 + $0x8] sm:$0xff] %v797
        %802 = vst [vmem:[%s368 + $0x10] sm:$0xff] %v798
        %803 = vst [vmem:[%s368 + $0x18] sm:$0xff] %v799
        %v812 = vrot.slane %v787, 4
        %v813 = vrot.slane %v789, 4
        %v814 = vrot.slane %v792, 4
        %v815 = vrot.slane %v794, 4
        %vm816 = vcmask 1043456
        %v817 = vsel %vm816, %v768, %v812
        %v818 = vsel %vm816, %v812, %v768
        %v819 = vrot.slane %v818, 4
        %v820 = vsel %vm816, %v770, %v813
        %v821 = vsel %vm816, %v813, %v770
        %v822 = vrot.slane %v821, 4
        %v823 = vsel %vm816, %v773, %v814
        %v824 = vsel %vm816, %v814, %v773
        %v825 = vrot.slane %v824, 4
        %v826 = vsel %vm816, %v775, %v815
        %v827 = vsel %vm816, %v815, %v775
        %v828 = vrot.slane %v827, 4
        %837 = vst [vmem:[#allocation1] ss:$2 sm:$0xff] %v817
        %v838 = vld.sshfl [vmem:[#allocation1] sm:$0xff pattern:$0x75316420]
        %v839 = vld.sshfl [vmem:[#allocation1 + $0x8] sm:$0xff pattern:$0x75316420]
        %s840 = scalar_lea.vmem [#allocation1], 16
        %841 = vst [vmem:[%s840] ss:$2 sm:$0xff] %v819
        %v842 = vld.sshfl [vmem:[#allocation1 + $0x10] sm:$0xff pattern:$0x75316420]
        %v843 = vld.sshfl [vmem:[#allocation1 + $0x18] sm:$0xff pattern:$0x75316420]
        %s844 = scalar_lea.vmem [#allocation1], 32
        %845 = vst [vmem:[%s844] ss:$2 sm:$0xff] %v820
        %v846 = vld.sshfl [vmem:[#allocation1 + $0x20] sm:$0xff pattern:$0x75316420]
        %v847 = vld.sshfl [vmem:[#allocation1 + $0x28] sm:$0xff pattern:$0x75316420]
        %s848 = scalar_lea.vmem [#allocation1], 48
        %849 = vst [vmem:[%s848] ss:$2 sm:$0xff] %v822
        %v850 = vld.sshfl [vmem:[#allocation1 + $0x30] sm:$0xff pattern:$0x75316420]
        %v851 = vld.sshfl [vmem:[#allocation1 + $0x38] sm:$0xff pattern:$0x75316420]
        %852 = vst [vmem:[#allocation1] ss:$2 sm:$0xff] %v823
        %v853 = vld.sshfl [vmem:[#allocation1] sm:$0xff pattern:$0x75316420]
        %v854 = vld.sshfl [vmem:[#allocation1 + $0x8] sm:$0xff pattern:$0x75316420]
        %855 = vst [vmem:[%s840] ss:$2 sm:$0xff] %v825
        %v856 = vld.sshfl [vmem:[#allocation1 + $0x10] sm:$0xff pattern:$0x75316420]
        %v857 = vld.sshfl [vmem:[#allocation1 + $0x18] sm:$0xff pattern:$0x75316420]
        %858 = vst [vmem:[%s844] ss:$2 sm:$0xff] %v826
        %v859 = vld.sshfl [vmem:[#allocation1 + $0x20] sm:$0xff pattern:$0x75316420]
        %v860 = vld.sshfl [vmem:[#allocation1 + $0x28] sm:$0xff pattern:$0x75316420]
        %861 = vst [vmem:[%s848] ss:$2 sm:$0xff] %v828
        %v862 = vld.sshfl [vmem:[#allocation1 + $0x30] sm:$0xff pattern:$0x75316420]
        %v863 = vld.sshfl [vmem:[#allocation1 + $0x38] sm:$0xff pattern:$0x75316420]
        %v880 = vsel %vm816, %v838, 0.0
        %v881 = vsel %vm816, %v839, 0.0
        %v882 = vadd.f32 %v880, %v881
        %883 = vadd.xlane.f32.xlu0 %v882
        %v884 = vpop.xlane.xlu0 %883
        %v885 = vsel %vm816, %v842, 0.0
        %v886 = vsel %vm816, %v843, 0.0
        %v887 = vadd.f32 %v885, %v886
        %888 = vadd.xlane.f32.xlu0 %v887
        %v889 = vpop.xlane.xlu0 %888
        %v890 = vsel %vm816, %v846, 0.0
        %v891 = vsel %vm816, %v847, 0.0
        %v892 = vadd.f32 %v890, %v891
        %893 = vadd.xlane.f32.xlu0 %v892
        %v894 = vpop.xlane.xlu0 %893
        %v895 = vsel %vm816, %v850, 0.0
        %v896 = vsel %vm816, %v851, 0.0
        %v897 = vadd.f32 %v895, %v896
        %898 = vadd.xlane.f32.xlu0 %v897
        %v899 = vpop.xlane.xlu0 %898
        %v900 = vsel %vm816, %v853, 0.0
        %v901 = vsel %vm816, %v854, 0.0
        %v902 = vadd.f32 %v900, %v901
        %903 = vadd.xlane.f32.xlu0 %v902
        %v904 = vpop.xlane.xlu0 %903
        %v905 = vsel %vm816, %v856, 0.0
        %v906 = vsel %vm816, %v857, 0.0
        %v907 = vadd.f32 %v905, %v906
        %908 = vadd.xlane.f32.xlu0 %v907
        %v909 = vpop.xlane.xlu0 %908
        %v910 = vsel %vm816, %v859, 0.0
        %v911 = vsel %vm816, %v860, 0.0
        %v912 = vadd.f32 %v910, %v911
        %913 = vadd.xlane.f32.xlu0 %v912
        %v914 = vpop.xlane.xlu0 %913
        %v915 = vsel %vm816, %v862, 0.0
        %v916 = vsel %vm816, %v863, 0.0
        %v917 = vadd.f32 %v915, %v916
        %918 = vadd.xlane.f32.xlu0 %v917
        %v919 = vpop.xlane.xlu0 %918
        %v928 = vlaneseq
        %v929 = vand.u32 %v928, 127
        %v930 = vperm.slane %v884, %v929
        %v931 = vperm.slane %v889, %v929
        %v932 = vperm.slane %v894, %v929
        %v933 = vperm.slane %v899, %v929
        %v934 = vperm.slane %v904, %v929
        %v935 = vperm.slane %v909, %v929
        %v936 = vperm.slane %v914, %v929
        %v937 = vperm.slane %v919, %v929
        %vm938 = vcmask 1041409
        %v939 = vsel %vm938, %v931, %v930
        %vm940 = vcmask 1042434
        %v941 = vsel %vm940, %v932, %v939
        %vm942 = vcmask 1043459
        %v943 = vsel %vm942, %v933, %v941
        %vm944 = vcmask 1044484
        %v945 = vsel %vm944, %v934, %v943
        %vm946 = vcmask 1045509
        %v947 = vsel %vm946, %v935, %v945
        %vm948 = vcmask 1046534
        %v949 = vsel %vm948, %v936, %v947
        %vm950 = vcmask 1047559
        %v951 = vsel %vm950, %v937, %v949
        %vm953 = vcmask 31744
        %954 = vst.msk [vmem:[%s423] sm:$0xff] %vm953, %v951
        %v955 = vmul.f32 %v817, %v817
        %v956 = vmul.f32 %v819, %v819
        %v957 = vmul.f32 %v820, %v820
        %v958 = vmul.f32 %v822, %v822
        %v959 = vmul.f32 %v823, %v823
        %v960 = vmul.f32 %v825, %v825
        %v961 = vmul.f32 %v826, %v826
        %v962 = vmul.f32 %v828, %v828
        %971 = vst [vmem:[#allocation1] ss:$2 sm:$0xff] %v955
        %v972 = vld.sshfl [vmem:[#allocation1] sm:$0xff pattern:$0x75316420]
        %v973 = vld.sshfl [vmem:[#allocation1 + $0x8] sm:$0xff pattern:$0x75316420]
        %s974 = scalar_lea.vmem [#allocation1], 16
        %975 = vst [vmem:[%s974] ss:$2 sm:$0xff] %v956
        %v976 = vld.sshfl [vmem:[#allocation1 + $0x10] sm:$0xff pattern:$0x75316420]
        %v977 = vld.sshfl [vmem:[#allocation1 + $0x18] sm:$0xff pattern:$0x75316420]
        %s978 = scalar_lea.vmem [#allocation1], 32
        %979 = vst [vmem:[%s978] ss:$2 sm:$0xff] %v957
        %v980 = vld.sshfl [vmem:[#allocation1 + $0x20] sm:$0xff pattern:$0x75316420]
        %v981 = vld.sshfl [vmem:[#allocation1 + $0x28] sm:$0xff pattern:$0x75316420]
        %s982 = scalar_lea.vmem [#allocation1], 48
        %983 = vst [vmem:[%s982] ss:$2 sm:$0xff] %v958
        %v984 = vld.sshfl [vmem:[#allocation1 + $0x30] sm:$0xff pattern:$0x75316420]
        %v985 = vld.sshfl [vmem:[#allocation1 + $0x38] sm:$0xff pattern:$0x75316420]
        %986 = vst [vmem:[#allocation1] ss:$2 sm:$0xff] %v959
        %v987 = vld.sshfl [vmem:[#allocation1] sm:$0xff pattern:$0x75316420]
        %v988 = vld.sshfl [vmem:[#allocation1 + $0x8] sm:$0xff pattern:$0x75316420]
        %989 = vst [vmem:[%s974] ss:$2 sm:$0xff] %v960
        %v990 = vld.sshfl [vmem:[#allocation1 + $0x10] sm:$0xff pattern:$0x75316420]
        %v991 = vld.sshfl [vmem:[#allocation1 + $0x18] sm:$0xff pattern:$0x75316420]
        %992 = vst [vmem:[%s978] ss:$2 sm:$0xff] %v961
        %v993 = vld.sshfl [vmem:[#allocation1 + $0x20] sm:$0xff pattern:$0x75316420]
        %v994 = vld.sshfl [vmem:[#allocation1 + $0x28] sm:$0xff pattern:$0x75316420]
        %995 = vst [vmem:[%s982] ss:$2 sm:$0xff] %v962
        %v996 = vld.sshfl [vmem:[#allocation1 + $0x30] sm:$0xff pattern:$0x75316420]
        %v997 = vld.sshfl [vmem:[#allocation1 + $0x38] sm:$0xff pattern:$0x75316420]
        %v1014 = vsel %vm816, %v972, 0.0
        %v1015 = vsel %vm816, %v973, 0.0
        %v1016 = vadd.f32 %v1014, %v1015
        %1017 = vadd.xlane.f32.xlu0 %v1016
        %v1018 = vpop.xlane.xlu0 %1017
        %v1019 = vsel %vm816, %v976, 0.0
        %v1020 = vsel %vm816, %v977, 0.0
        %v1021 = vadd.f32 %v1019, %v1020
        %1022 = vadd.xlane.f32.xlu0 %v1021
        %v1023 = vpop.xlane.xlu0 %1022
        %v1024 = vsel %vm816, %v980, 0.0
        %v1025 = vsel %vm816, %v981, 0.0
        %v1026 = vadd.f32 %v1024, %v1025
        %1027 = vadd.xlane.f32.xlu0 %v1026
        %v1028 = vpop.xlane.xlu0 %1027
        %v1029 = vsel %vm816, %v984, 0.0
        %v1030 = vsel %vm816, %v985, 0.0
        %v1031 = vadd.f32 %v1029, %v1030
        %1032 = vadd.xlane.f32.xlu0 %v1031
        %v1033 = vpop.xlane.xlu0 %1032
        %v1034 = vsel %vm816, %v987, 0.0
        %v1035 = vsel %vm816, %v988, 0.0
        %v1036 = vadd.f32 %v1034, %v1035
        %1037 = vadd.xlane.f32.xlu0 %v1036
        %v1038 = vpop.xlane.xlu0 %1037
        %v1039 = vsel %vm816, %v990, 0.0
        %v1040 = vsel %vm816, %v991, 0.0
        %v1041 = vadd.f32 %v1039, %v1040
        %1042 = vadd.xlane.f32.xlu0 %v1041
        %v1043 = vpop.xlane.xlu0 %1042
        %v1044 = vsel %vm816, %v993, 0.0
        %v1045 = vsel %vm816, %v994, 0.0
        %v1046 = vadd.f32 %v1044, %v1045
        %1047 = vadd.xlane.f32.xlu0 %v1046
        %v1048 = vpop.xlane.xlu0 %1047
        %v1049 = vsel %vm816, %v996, 0.0
        %v1050 = vsel %vm816, %v997, 0.0
        %v1051 = vadd.f32 %v1049, %v1050
        %1052 = vadd.xlane.f32.xlu0 %v1051
        %v1053 = vpop.xlane.xlu0 %1052
        %v1062 = vperm.slane %v1018, %v929
        %v1063 = vperm.slane %v1023, %v929
        %v1064 = vperm.slane %v1028, %v929
        %v1065 = vperm.slane %v1033, %v929
        %v1066 = vperm.slane %v1038, %v929
        %v1067 = vperm.slane %v1043, %v929
        %v1068 = vperm.slane %v1048, %v929
        %v1069 = vperm.slane %v1053, %v929
        %v1070 = vsel %vm938, %v1063, %v1062
        %v1071 = vsel %vm940, %v1064, %v1070
        %v1072 = vsel %vm942, %v1065, %v1071
        %v1073 = vsel %vm944, %v1066, %v1072
        %v1074 = vsel %vm946, %v1067, %v1073
        %v1075 = vsel %vm948, %v1068, %v1074
        %v1076 = vsel %vm950, %v1069, %v1075
        %1078 = vst.msk [vmem:[%s431] sm:$0xff] %vm953, %v1076
        %s1079 = sand.u32 %s168, 1
        %s1080 = sand.u32 %s168, 1
        %s1081 = smul.addr %s1080, 32
        %s1082 = scalar_lea.vmem [#allocation7], %s1081
        %p1083 = scmp.lt.s32.totalorder %s25, 1
        %s1084 = scalar_select %p1083, %s25, 1
        %p1085 = scmp.lt.s32.totalorder %s26, 1
        %s1086 = scalar_select %p1085, %s26, 1
        %s1087 = smul.addr %s1084, 2
        %s1088 = sadd.s32 %s1086, %s1087
        %s1089 = smul.addr %s1088, 8
        %s1090 = scalar_lea.vmem %s6, %s1089
        %p1091 = scmp.lt.s32.totalorder %s25, 1
        %s1092 = scalar_select %p1091, %s25, 1
        %p1093 = scmp.lt.s32.totalorder %s26, 1
        %s1094 = scalar_select %p1093, %s26, 1
        %s1095 = smul.addr %s1092, 2
        %s1096 = sadd.s32 %s1094, %s1095
        %s1097 = smul.addr %s1096, 8
        %s1098 = scalar_lea.vmem %s7, %s1097
        // Predicated region
        $region49: #{upconv_forward.1} parent=39 // pred_check
          %p1099 = pneg %p178
        $region50: #{upconv_forward.1} parent=39 // pred_check_branch
          %1101 = sbr.rel (%p1099) target = $region52
        $region51: #{upconv_forward.1} parent=39 // pred_region
          %s1102 = smul.u32 2, %s26
          %s1103 = smul.addr %s25, 16
          %s1104 = sadd.s32 %s1102, %s1103
          %s1105 = smul.addr %s1104, 4
          %s1106 = scalar_lea.vmem %s5, %s1105
          // Predicated region
          $region53: #{upconv_forward.1} parent=51 // pred_check
            _
          $region54: #{upconv_forward.1} parent=51 // pred_check_branch
            %1108 = sbr.rel (0) target = $region56
          $region55: #{upconv_forward.1} parent=51 // pred_region
            // Predicated region
            $region57: #{upconv_forward.1} parent=55 // pred_check
              _
            $region58: #{upconv_forward.1} parent=55 // pred_check_branch
              %1110 = sbr.rel (0) target = $region60
            $region59: #{upconv_forward.1} parent=55 // pred_region
              // Predicated region
              $region72: #{upconv_forward.1} parent=59 // pred_check
                _
              $region73: #{upconv_forward.1} parent=59 // pred_check_branch
                %1132 = sbr.rel (0) target = $region75
              $region74: #{upconv_forward.1} parent=59 // pred_region
                loop: start=0, step=1, limit=1
                $region76: #{upconv_forward.1} parent=74 // loop_pre_header
                  _
                $region77: #{upconv_forward.1} parent=74 // loop_header
                  %s1134 = sphi 0, %s1138
                  %p1135 = scmp.ge.s32.totalorder %s1134, 1
                  %s1139 = sphi %s1082, %s1082
                  %s1140 = sphi %s1106, %s1106
                $region78: #{upconv_forward.1} parent=74 // loop_header_branch
                  %1137 = sbr.rel (%p1135) target = $region82
                $region79: #{upconv_forward.1} parent=74 // loop_body
                  %v1141 = vld [vmem:[%s1139] sm:$0xff]
                  %1142 = vst [vmem:[%s1140] sm:$0xff] %v1141
                  %v1143 = vld [vmem:[%s1139 + $0x8] sm:$0xff]
                  %1144 = vst [vmem:[%s1140 + $0x10] sm:$0xff] %v1143
                  %v1145 = vld [vmem:[%s1139 + $0x10] sm:$0xff]
                  %1146 = vst [vmem:[%s1140 + $0x20] sm:$0xff] %v1145
                  %v1147 = vld [vmem:[%s1139 + $0x18] sm:$0xff]
                  %1148 = vst [vmem:[%s1140 + $0x30] sm:$0xff] %v1147
                $region80: #{upconv_forward.1} parent=74 // loop_footer
                  %s1138 = sadd.s32 1, %s1134
                $region81: #{upconv_forward.1} parent=74 // loop_footer_branch
                  %1133 = sbr.rel target = $region77
                $region82: #{upconv_forward.1} parent=74 // loop_exit
                  _
              $region75: #{upconv_forward.1} parent=59 // pred_fallthru
                _
              // Predicated region
              $region83: #{upconv_forward.1} parent=59 // pred_check
                _
              $region84: #{upconv_forward.1} parent=59 // pred_check_branch
                %1150 = sbr.rel target = $region86
              $region85: #{upconv_forward.1} parent=59 // pred_region
                _
              $region86: #{upconv_forward.1} parent=59 // pred_fallthru
                _
            $region60: #{upconv_forward.1} parent=55 // pred_fallthru
              _
            // Predicated region
            $region61: #{upconv_forward.1} parent=55 // pred_check
              _
            $region62: #{upconv_forward.1} parent=55 // pred_check_branch
              %1112 = sbr.rel target = $region64
            $region63: #{upconv_forward.1} parent=55 // pred_region
              %s1114 = ssub.s32 256, 1
              loop: start=0, step=1, limit=1
              $region65: #{upconv_forward.1} parent=63 // loop_pre_header
                _
              $region66: #{upconv_forward.1} parent=63 // loop_header
                %s1116 = sphi 0, %s1120
                %p1117 = scmp.ge.s32.totalorder %s1116, 1
                %s1121 = sphi %s1082, %s1082
                %s1122 = sphi %s1106, %s1106
              $region67: #{upconv_forward.1} parent=63 // loop_header_branch
                %1119 = sbr.rel (%p1117) target = $region71
              $region68: #{upconv_forward.1} parent=63 // loop_body
                %v1123 = vld [vmem:[%s1121] sm:%s1114]
                %1124 = vst [vmem:[%s1122] sm:%s1114] %v1123
                %v1125 = vld [vmem:[%s1121 + $0x8] sm:%s1114]
                %1126 = vst [vmem:[%s1122 + $0x10] sm:%s1114] %v1125
                %v1127 = vld [vmem:[%s1121 + $0x10] sm:%s1114]
                %1128 = vst [vmem:[%s1122 + $0x20] sm:%s1114] %v1127
                %v1129 = vld [vmem:[%s1121 + $0x18] sm:%s1114]
                %1130 = vst [vmem:[%s1122 + $0x30] sm:%s1114] %v1129
              $region69: #{upconv_forward.1} parent=63 // loop_footer
                %s1120 = sadd.s32 1, %s1116
              $region70: #{upconv_forward.1} parent=63 // loop_footer_branch
                %1115 = sbr.rel target = $region66
              $region71: #{upconv_forward.1} parent=63 // loop_exit
                _
            $region64: #{upconv_forward.1} parent=55 // pred_fallthru
              _
          $region56: #{upconv_forward.1} parent=51 // pred_fallthru
            _
          %1151 = vnop
        $region52: #{upconv_forward.1} parent=39 // pred_fallthru
          _
        // Predicated region
        $region87: #{upconv_forward.1} parent=39 // pred_check
          %p1152 = pneg %p206
        $region88: #{upconv_forward.1} parent=39 // pred_check_branch
          %1154 = sbr.rel (%p1152) target = $region90
        $region89: #{upconv_forward.1} parent=39 // pred_region
          _
        $region90: #{upconv_forward.1} parent=39 // pred_fallthru
          _
        // Predicated region
        $region91: #{upconv_forward.1} parent=39 // pred_check
          %p1155 = pneg %p234
        $region92: #{upconv_forward.1} parent=39 // pred_check_branch
          %1157 = sbr.rel (%p1155) target = $region94
        $region93: #{upconv_forward.1} parent=39 // pred_region
          _
        $region94: #{upconv_forward.1} parent=39 // pred_fallthru
          _
      $region40: #{upconv_forward.1} parent=5 // pred_fallthru
        _
      %p1158 = scmp.le.s32.totalorder 2, %s16
      // Predicated region
      $region95: #{upconv_forward.1} parent=5 // pred_check
        %p1159 = pneg %p1158
      $region96: #{upconv_forward.1} parent=5 // pred_check_branch
        %1161 = sbr.rel (%p1159) target = $region98
      $region97: #{upconv_forward.1} parent=5 // pred_region
        %s1162 = ssub.s32 %s16, 2
        // Predicated region
        $region99: #{upconv_forward.1} parent=97 // pred_check
          %p1163 = pneg %p184
        $region100: #{upconv_forward.1} parent=97 // pred_check_branch
          %1165 = sbr.rel (%p1163) target = $region102
        $region101: #{upconv_forward.1} parent=97 // pred_region
          %s1166 = sand.u32 %s169, 1
          %s1167 = sand.u32 %s169, 1
          %s1168 = smul.addr %s1167, 32
          %s1169 = scalar_lea.vmem [#allocation7], %s1168
        $region102: #{upconv_forward.1} parent=97 // pred_fallthru
          _
        // Predicated region
        $region103: #{upconv_forward.1} parent=97 // pred_check
          %p1170 = pneg %p212
        $region104: #{upconv_forward.1} parent=97 // pred_check_branch
          %1172 = sbr.rel (%p1170) target = $region106
        $region105: #{upconv_forward.1} parent=97 // pred_region
          %p1173 = scmp.lt.s32.totalorder %s27, 1
          %s1174 = scalar_select %p1173, %s27, 1
          %p1175 = scmp.lt.s32.totalorder %s28, 1
          %s1176 = scalar_select %p1175, %s28, 1
          %s1177 = smul.addr %s1174, 2
          %s1178 = sadd.s32 %s1176, %s1177
          %s1179 = smul.addr %s1178, 8
          %s1180 = scalar_lea.vmem %s6, %s1179
        $region106: #{upconv_forward.1} parent=97 // pred_fallthru
          _
        // Predicated region
        $region107: #{upconv_forward.1} parent=97 // pred_check
          %p1181 = pneg %p240
        $region108: #{upconv_forward.1} parent=97 // pred_check_branch
          %1183 = sbr.rel (%p1181) target = $region110
        $region109: #{upconv_forward.1} parent=97 // pred_region
          %p1184 = scmp.lt.s32.totalorder %s27, 1
          %s1185 = scalar_select %p1184, %s27, 1
          %p1186 = scmp.lt.s32.totalorder %s28, 1
          %s1187 = scalar_select %p1186, %s28, 1
          %s1188 = smul.addr %s1185, 2
          %s1189 = sadd.s32 %s1187, %s1188
          %s1190 = smul.addr %s1189, 8
          %s1191 = scalar_lea.vmem %s7, %s1190
        $region110: #{upconv_forward.1} parent=97 // pred_fallthru
          _
      $region98: #{upconv_forward.1} parent=5 // pred_fallthru
        _
    $region6: #{upconv_forward.1} parent=1 // loop_footer
      %s20 = sadd.s32 1, %s16
    $region7: #{upconv_forward.1} parent=1 // loop_footer_branch
      %15 = sbr.rel target = $region3
    $region8: #{upconv_forward.1} parent=1 // loop_exit
      _
    %1192 = vsyncpa [#allocation4], 1
    %s1193 = scalar_lea.sflag [#allocation4], 1
    %1194 = vsyncpa %s1193, 1
    %1195 = vsyncpa [#allocation6], 1

</llo_original>
